<compile_context>
chip_gen: v6e
topology: v6e:2x2x1
jax: 0.10.0
libtpu: 0.0.40
codegen_flags: <defaults>
</compile_context>

<pallas_src>
import functools

import jax
import jax.numpy as jnp
from jax import lax
from jax.experimental import pallas as pl
from jax.experimental.pallas import tpu as pltpu

LANE = 128              # MXU / vreg lane width: pad output channels & K to this
DEFAULT_TILE_M = 1024   # conv1 row tile (flattened B*OH*OW)
DEFAULT_TILE_S = 1024   # fused conv+pool spatial tile (per batch element)


def _round_up(x, m):
    return ((x + m - 1) // m) * m


@functools.lru_cache(maxsize=1)
def _vmem_limit_bytes():
    """Generation-aware VMEM budget: ~3/4 of physical (96 MiB v5e/v6e, 48 MiB v7x)."""
    cap = 64 * 1024 * 1024
    try:
        cap = int(getattr(pltpu.get_tpu_info(), "vmem_capacity_bytes", cap))
    except Exception:
        pass
    return int(min(cap * 3 // 4, 110 * 1024 * 1024))


def _pick_tile(n, tile, align=16):
    """Largest tile <= `tile`, multiple of `align`, keeping >=2 grid tiles when possible
    so v7x's two TensorCores both get work under dimension_semantics=('parallel',)."""
    half = _round_up(max(n // 2, 1), align)
    return max(align, min(tile, half, _round_up(n, align)))


# ---------------------------------------------------------------------------
# Pallas kernels
# ---------------------------------------------------------------------------
def _conv_relu_matmul_kernel(p_ref, w_ref, b_ref, o_ref):
    """One M-tile of im2col conv:  o = relu(p @ w + b).

    p:(TILE_M, Kp) bf16   w:(Kp, Cout_p) bf16 (resident)   b:(1, Cout_p) f32
    o:(TILE_M, Cout_p) bf16 (Cout_p = 128-padded -> lane-dense stores).
    Accumulation and the bias/ReLU epilogue stay in f32.
    """
    acc = jnp.dot(p_ref[...], w_ref[...], preferred_element_type=jnp.float32)
    o_ref[...] = jnp.maximum(acc + b_ref[...], 0.0).astype(o_ref.dtype)


def _make_conv_relu_pool_kernel(valid_s):
    """Fused last conv + ReLU + global-avg-pool partial sums.

    p:(B, TILE_S, Kp) bf16   w:(Kp, Cout_p) bf16   b:(1, Cout_p) f32
    psum:(1, B, Cout_p) f32  = per-tile channel partial sums (masked so padded
    spatial rows, whose relu(bias) would be non-zero, never contribute).
    The full conv feature map is never written to HBM.
    """

    def kernel(p_ref, w_ref, b_ref, psum_ref):
        i = pl.program_id(0)
        nb, tsz, kp = p_ref.shape
        acc = jnp.dot(p_ref[...].reshape(nb * tsz, kp), w_ref[...],
                      preferred_element_type=jnp.float32)
        y = jnp.maximum(acc + b_ref[...], 0.0).reshape(nb, tsz, -1)
        s_idx = i * tsz + lax.broadcasted_iota(jnp.int32, (1, tsz, 1), 1)
        y = jnp.where(s_idx < valid_s, y, 0.0)
        psum_ref[...] = jnp.sum(y, axis=1)[None]

    return kernel


def _head_kernel(pooled_ref, w1_ref, b1_ref, w2_ref, b2_ref, o_ref):
    """fc_loc on the pooled vector: Linear -> ReLU -> Linear -> final F.relu.

    (nn.Dropout(0.3) is identity at inference.)  All tiny, single grid step.
    """
    h = jnp.dot(pooled_ref[...], w1_ref[...],
                preferred_element_type=jnp.float32) + b1_ref[...]
    h = jnp.maximum(h, 0.0)                                   # nn.ReLU(True)
    t = jnp.dot(h, w2_ref[...],
                preferred_element_type=jnp.float32) + b2_ref[...]
    o_ref[...] = jnp.maximum(t, 0.0)                          # final F.relu


# ---------------------------------------------------------------------------
# Wrappers
# ---------------------------------------------------------------------------
def _prep_weights(weight, bias):
    """(Cout,Cin,KH,KW) PyTorch conv weight -> (Kp, Cout_p) bf16 + (1, Cout_p) f32 bias.

    Output channels are zero-padded to 128 lanes with zero bias, so padded
    channels stay exactly 0 after ReLU and never perturb downstream layers.
    K = KH*KW*Cin (real input channels only) padded to a multiple of 128.
    """
    Cout, Cin, KH, KW = weight.shape
    Cout_p = _round_up(Cout, LANE)
    K = KH * KW * Cin
    Kp = _round_up(K, LANE)
    w2d = jnp.transpose(weight.astype(jnp.float32), (2, 3, 1, 0)).reshape(K, Cout)
    w2d = jnp.pad(w2d, ((0, Kp - K), (0, Cout_p - Cout))).astype(jnp.bfloat16)
    b2d = jnp.pad(bias.astype(jnp.float32), (0, Cout_p - Cout)).reshape(1, Cout_p)
    return w2d, b2d, Cin, KH, KW, K, Kp, Cout_p


def _im2col(x_nhwc, Cin, KH, KW, stride, pad):
    """Patches (B, OH*OW, KH*KW*Cin) bf16, built from the REAL Cin channels only."""
    B, H, W, _ = x_nhwc.shape
    OH = (H + 2 * pad - KH) // stride + 1
    OW = (W + 2 * pad - KW) // stride + 1
    xs = x_nhwc[..., :Cin].astype(jnp.bfloat16)
    xp = jnp.pad(xs, ((0, 0), (pad, pad), (pad, pad), (0, 0)))
    cols = [xp[:, i:i + stride * OH:stride, j:j + stride * OW:stride, :]
            for i in range(KH) for j in range(KW)]
    patches = jnp.stack(cols, axis=3).reshape(B, OH * OW, KH * KW * Cin)
    return patches, OH, OW


def conv2d_relu(x_nhwc, weight, bias, *, stride, pad, tile_m=DEFAULT_TILE_M):
    """3x3 conv (PyTorch weight layout (Cout,Cin,KH,KW)) + ReLU.

    x_nhwc may carry more channels than Cin (trailing padded channels are
    ignored at patch-construction time).  Returns NHWC, channels 128-padded.
    """
    B = x_nhwc.shape[0]
    w2d, b2d, Cin, KH, KW, K, Kp, Cout_p = _prep_weights(weight, bias)
    patches, OH, OW = _im2col(x_nhwc, Cin, KH, KW, stride, pad)
    M = B * OH * OW
    patches = patches.reshape(M, K)

    tm = _pick_tile(M, tile_m, 16)
    Mp = _round_up(M, tm)
    patches = jnp.pad(patches, ((0, Mp - M), (0, Kp - K)))

    grid = (Mp // tm,)
    flops = 2 * Mp * Kp * Cout_p
    bytes_accessed = Mp * Kp * 2 + Kp * Cout_p * 2 + Cout_p * 4 + Mp * Cout_p * 2

    out = pl.pallas_call(
        _conv_relu_matmul_kernel,
        out_shape=jax.ShapeDtypeStruct((Mp, Cout_p), jnp.bfloat16),
        grid=grid,
        in_specs=[
            pl.BlockSpec((tm, Kp), lambda i: (i, 0)),        # patch row tile
            # TODO(synk): pipeline_mode=pl.Buffered(1) on the resident weight /
            # bias would drop one redundant VMEM buffer each (minor).
            pl.BlockSpec((Kp, Cout_p), lambda i: (0, 0)),    # resident weights
            pl.BlockSpec((1, Cout_p), lambda i: (0, 0)),     # resident bias
        ],
        out_specs=pl.BlockSpec((tm, Cout_p), lambda i: (i, 0)),
        compiler_params=pltpu.CompilerParams(
            dimension_semantics=("parallel",),
            vmem_limit_bytes=_vmem_limit_bytes(),
        ),
        cost_estimate=pl.CostEstimate(
            flops=flops, transcendentals=0, bytes_accessed=bytes_accessed),
    )(patches, w2d, b2d)

    return out[:M].reshape(B, OH, OW, Cout_p)


def conv2d_relu_avgpool(x_nhwc, weight, bias, *, stride, pad,
                        tile_s=DEFAULT_TILE_S):
    """Last conv + ReLU fused with AdaptiveAvgPool2d((1,1)).

    Returns the pooled mean (B, Cout_p) in f32.  Only tiny per-tile partial
    channel sums go through HBM; the conv feature map itself is never stored.
    """
    B = x_nhwc.shape[0]
    w2d, b2d, Cin, KH, KW, K, Kp, Cout_p = _prep_weights(weight, bias)
    patches, OH, OW = _im2col(x_nhwc, Cin, KH, KW, stride, pad)
    S = OH * OW

    ts = _pick_tile(S, tile_s, 16)
    Sp = _round_up(S, ts)
    patches = jnp.pad(patches, ((0, 0), (0, Sp - S), (0, Kp - K)))
    num_tiles = Sp // ts

    flops = 2 * B * Sp * Kp * Cout_p
    bytes_accessed = (B * Sp * Kp * 2 + Kp * Cout_p * 2 + Cout_p * 4
                      + num_tiles * B * Cout_p * 4)

    psums = pl.pallas_call(
        _make_conv_relu_pool_kernel(S),
        out_shape=jax.ShapeDtypeStruct((num_tiles, B, Cout_p), jnp.float32),
        grid=(num_tiles,),
        in_specs=[
            pl.BlockSpec((B, ts, Kp), lambda i: (0, i, 0)),  # per-batch spatial tile
            pl.BlockSpec((Kp, Cout_p), lambda i: (0, 0)),    # resident weights
            pl.BlockSpec((1, Cout_p), lambda i: (0, 0)),     # resident bias
        ],
        out_specs=pl.BlockSpec((1, B, Cout_p), lambda i: (i, 0, 0)),
        compiler_params=pltpu.CompilerParams(
            dimension_semantics=("parallel",),
            vmem_limit_bytes=_vmem_limit_bytes(),
        ),
        cost_estimate=pl.CostEstimate(
            flops=flops, transcendentals=0, bytes_accessed=bytes_accessed),
    )(patches, w2d, b2d)

    pooled = jnp.sum(psums, axis=0) * (1.0 / float(S))       # (B, Cout_p) mean
    return pooled


def fc_head(pooled, w1, b1, w2, b2):
    """avgpool'd features -> fc_loc (Dropout is identity) -> final relu."""
    B, Cp = pooled.shape
    in_dim, fc_dim = w1.shape
    num_out = w2.shape[1]
    Np = _round_up(num_out, LANE)    # lane-dense output, sliced back to 9

    # fc1 input dim zero-padded to the 128-padded channel count (padded pooled
    # channels are exactly zero, so this is a no-op numerically).
    w1p = jnp.zeros((Cp, fc_dim), jnp.float32).at[:in_dim, :].set(w1.astype(jnp.float32))
    b1p = b1.astype(jnp.float32).reshape(1, fc_dim)
    w2p = jnp.pad(w2.astype(jnp.float32), ((0, 0), (0, Np - num_out)))
    b2p = jnp.pad(b2.astype(jnp.float32).reshape(1, num_out),
                  ((0, 0), (0, Np - num_out)))

    theta = pl.pallas_call(
        _head_kernel,
        out_shape=jax.ShapeDtypeStruct((B, Np), jnp.float32),
        grid=(1,),
        in_specs=[
            pl.BlockSpec((B, Cp), lambda i: (0, 0)),
            pl.BlockSpec((Cp, fc_dim), lambda i: (0, 0)),
            pl.BlockSpec((1, fc_dim), lambda i: (0, 0)),
            pl.BlockSpec((fc_dim, Np), lambda i: (0, 0)),
            pl.BlockSpec((1, Np), lambda i: (0, 0)),
        ],
        out_specs=pl.BlockSpec((B, Np), lambda i: (0, 0)),
        compiler_params=pltpu.CompilerParams(
            dimension_semantics=("arbitrary",),
            vmem_limit_bytes=_vmem_limit_bytes(),
        ),
    )(pooled, w1p, b1p, w2p, b2p)
    return theta[:, :num_out]


def color_map_net_forward(x_nchw, params):
    """ColorMapNet.forward: backbone -> avgpool -> fc_loc -> relu -> view(-1,3,3)."""
    # Cast to bf16 BEFORE the layout transpose: halves glue-op HBM traffic.
    x = jnp.transpose(x_nchw.astype(jnp.bfloat16), (0, 2, 3, 1))   # NCHW -> NHWC

    # Stand-in backbone (see TODO at top of file): two 3x3 stride-2 conv+ReLU.
    x = conv2d_relu(x, params["conv1_w"], params["conv1_b"], stride=2, pad=1)
    # Last conv fused with the global average pool (no feature-map HBM roundtrip).
    pooled = conv2d_relu_avgpool(x, params["conv2_w"], params["conv2_b"],
                                 stride=2, pad=1)

    theta = fc_head(pooled, params["fc1_w"], params["fc1_b"],
                    params["fc2_w"], params["fc2_b"])
    return theta.reshape(-1, 3, 3)


def init_params(last_conv_dim=32, fc_dim=32):
    """Deterministic synthetic parameters (shapes implied by the module)."""
    k = jax.random.PRNGKey(42)
    k1, k2, k3, k4, k5 = jax.random.split(k, 5)
    return {
        # tiny backbone: 3 -> 16 -> last_conv_dim, each 3x3 stride-2
        "conv1_w": 0.1 * jax.random.normal(k1, (16, 3, 3, 3), jnp.float32),
        "conv1_b": 0.01 * jax.random.normal(k2, (16,), jnp.float32),
        "conv2_w": 0.1 * jax.random.normal(k3, (last_conv_dim, 16, 3, 3), jnp.float32),
        "conv2_b": 0.01 * jax.random.normal(k4, (last_conv_dim,), jnp.float32),
        # fc_loc[1]: Linear(last_conv_dim, fc_dim)  (stored as (in, out) for x @ W)
        "fc1_w": 0.1 * jax.random.normal(k5, (last_conv_dim, fc_dim), jnp.float32),
        "fc1_b": jnp.zeros((fc_dim,), jnp.float32),
        # fc_loc[-1]: Linear(fc_dim, 9), weight zeroed and bias set to identity
        # exactly as in ColorMapNet.__init__
        "fc2_w": jnp.zeros((fc_dim, 9), jnp.float32),
        "fc2_b": jnp.array([1, 0, 0, 0, 1, 0, 0, 0, 1], jnp.float32),
    }


if __name__ == "__main__":
    params = init_params(last_conv_dim=32, fc_dim=32)
    x = jax.random.normal(jax.random.PRNGKey(0), (2, 3, 16, 16), jnp.float32)  # NCHW

    fwd = jax.jit(color_map_net_forward)
    out = fwd(x, params)
    out = jax.block_until_ready(out)

    assert out.shape == (2, 3, 3), out.shape
    # With fc2 weight zeroed and identity bias (as in the module init), the
    # output must be the 3x3 identity for every batch element.
    expected = jnp.broadcast_to(jnp.eye(3, dtype=jnp.float32), (2, 3, 3))
    assert jnp.allclose(out, expected, atol=1e-5), out

    print("KERNEL_OK")
</pallas_src>

<mosaic_0001>
module attributes {stable_mosaic.version = 11 : i64} {
  func.func @_conv_relu_matmul_kernel(%arg0: i32, %arg1: memref<64x128xbf16, #tpu.memory_space<vmem>>, %arg2: memref<128x128xbf16, #tpu.memory_space<vmem>>, %arg3: memref<1x128xf32, #tpu.memory_space<vmem>>, %arg4: memref<64x128xbf16, #tpu.memory_space<vmem>>) attributes {dimension_semantics = [#tpu.dimension_semantics<parallel>], iteration_bounds = array<i64: 2>, scalar_prefetch = 0 : i64, scratch_operands = 0 : i64, tpu.core_type = #tpu.core_type<tc>, window_params = [{transform_indices = @transform_0, window_bounds = array<i64: 64, 128>}, {pipeline_mode = #tpu.pipeline_mode<synchronous>, transform_indices = @transform_1, window_bounds = array<i64: 128, 128>}, {pipeline_mode = #tpu.pipeline_mode<synchronous>, transform_indices = @transform_2, window_bounds = array<i64: 1, 128>}, {transform_indices = @transform_3, window_bounds = array<i64: 64, 128>}]} {
    %c0 = arith.constant 0 : index
    %c0_0 = arith.constant 0 : index
    %0 = vector.load %arg1[%c0, %c0_0] : memref<64x128xbf16, #tpu.memory_space<vmem>>, vector<64x128xbf16>
    %c0_1 = arith.constant 0 : index
    %c0_2 = arith.constant 0 : index
    %1 = vector.load %arg2[%c0_1, %c0_2] : memref<128x128xbf16, #tpu.memory_space<vmem>>, vector<128x128xbf16>
    %cst = arith.constant dense<0.000000e+00> : vector<64x128xf32>
    %2 = tpu.matmul %0, %1, %cst {dimension_numbers = #tpu.dot_dimension_numbers<[1], [0], [0], [1], [0, 0, 1, 1], [], []>} : vector<64x128xbf16>, vector<128x128xbf16>, vector<64x128xf32> -> vector<64x128xf32>
    %c0_3 = arith.constant 0 : index
    %c0_4 = arith.constant 0 : index
    %3 = vector.load %arg3[%c0_3, %c0_4] : memref<1x128xf32, #tpu.memory_space<vmem>>, vector<1x128xf32>
    %4 = vector.broadcast %3 : vector<1x128xf32> to vector<64x128xf32>
    %5 = arith.addf %2, %4 : vector<64x128xf32>
    %cst_5 = arith.constant 0.000000e+00 : f32
    %6 = vector.broadcast %cst_5 : f32 to vector<64x128xf32>
    %7 = arith.maximumf %5, %6 : vector<64x128xf32>
    %8 = arith.truncf %7 : vector<64x128xf32> to vector<64x128xbf16>
    %c0_6 = arith.constant 0 : index
    %c0_7 = arith.constant 0 : index
    %9 = vector.load %arg4[%c0_6, %c0_7] : memref<64x128xbf16, #tpu.memory_space<vmem>>, vector<64x128xbf16>
    tpu.vector_store %arg4[%c0_6, %c0_7], %8 {strides = array<i32>} : memref<64x128xbf16, #tpu.memory_space<vmem>>, vector<64x128xbf16>,
    return
  }
  func.func @transform_0(%arg0: i32) -> (i32, i32) {
    %c0_i32 = arith.constant 0 : i32
    %c0_i32_0 = arith.constant 0 : i32
    return %arg0, %c0_i32 : i32, i32
  }
  func.func @transform_1(%arg0: i32) -> (i32, i32) {
    %c0_i32 = arith.constant 0 : i32
    %c0_i32_0 = arith.constant 0 : i32
    %c0_i32_1 = arith.constant 0 : i32
    return %c0_i32, %c0_i32_0 : i32, i32
  }
  func.func @transform_2(%arg0: i32) -> (i32, i32) {
    %c0_i32 = arith.constant 0 : i32
    %c0_i32_0 = arith.constant 0 : i32
    %c0_i32_1 = arith.constant 0 : i32
    return %c0_i32, %c0_i32_0 : i32, i32
  }
  func.func @transform_3(%arg0: i32) -> (i32, i32) {
    %c0_i32 = arith.constant 0 : i32
    %c0_i32_0 = arith.constant 0 : i32
    return %arg0, %c0_i32 : i32, i32
  }
}

module attributes {stable_mosaic.version = 11 : i64} {
  func.func @kernel(%arg0: i32, %arg1: memref<2x16x256xbf16, #tpu.memory_space<vmem>>, %arg2: memref<256x128xbf16, #tpu.memory_space<vmem>>, %arg3: memref<1x128xf32, #tpu.memory_space<vmem>>, %arg4: memref<1x2x128xf32, #tpu.memory_space<vmem>>) attributes {dimension_semantics = [#tpu.dimension_semantics<parallel>], iteration_bounds = array<i64: 1>, scalar_prefetch = 0 : i64, scratch_operands = 0 : i64, tpu.core_type = #tpu.core_type<tc>, window_params = [{transform_indices = @transform_0, window_bounds = array<i64: 2, 16, 256>}, {pipeline_mode = #tpu.pipeline_mode<synchronous>, transform_indices = @transform_1, window_bounds = array<i64: 256, 128>}, {pipeline_mode = #tpu.pipeline_mode<synchronous>, transform_indices = @transform_2, window_bounds = array<i64: 1, 128>}, {transform_indices = @transform_3, window_bounds = array<i64: 1, 2, 128>}]} {
    %c0 = arith.constant 0 : index
    %c0_0 = arith.constant 0 : index
    %c0_1 = arith.constant 0 : index
    %0 = vector.load %arg1[%c0, %c0_0, %c0_1] : memref<2x16x256xbf16, #tpu.memory_space<vmem>>, vector<2x16x256xbf16>
    %1 = vector.shape_cast %0 : vector<2x16x256xbf16> to vector<32x256xbf16>
    %c0_2 = arith.constant 0 : index
    %c0_3 = arith.constant 0 : index
    %2 = vector.load %arg2[%c0_2, %c0_3] : memref<256x128xbf16, #tpu.memory_space<vmem>>, vector<256x128xbf16>
    %cst = arith.constant dense<0.000000e+00> : vector<32x128xf32>
    %3 = tpu.matmul %1, %2, %cst {dimension_numbers = #tpu.dot_dimension_numbers<[1], [0], [0], [1], [0, 0, 1, 1], [], []>} : vector<32x256xbf16>, vector<256x128xbf16>, vector<32x128xf32> -> vector<32x128xf32>
    %c0_4 = arith.constant 0 : index
    %c0_5 = arith.constant 0 : index
    %4 = vector.load %arg3[%c0_4, %c0_5] : memref<1x128xf32, #tpu.memory_space<vmem>>, vector<1x128xf32>
    %5 = vector.broadcast %4 : vector<1x128xf32> to vector<32x128xf32>
    %6 = arith.addf %3, %5 : vector<32x128xf32>
    %cst_6 = arith.constant 0.000000e+00 : f32
    %7 = vector.broadcast %cst_6 : f32 to vector<32x128xf32>
    %8 = arith.maximumf %6, %7 : vector<32x128xf32>
    %9 = vector.shape_cast %8 : vector<32x128xf32> to vector<2x16x128xf32>
    %c16_i32 = arith.constant 16 : i32
    %10 = arith.muli %arg0, %c16_i32 : i32
    %11 = tpu.iota {dimensions = array<i32: 1>} : vector<1x16x1xi32>
    %12 = vector.broadcast %10 : i32 to vector<1x16x1xi32>
    %13 = arith.addi %12, %11 : vector<1x16x1xi32>
    %c16_i32_7 = arith.constant 16 : i32
    %14 = vector.broadcast %c16_i32_7 : i32 to vector<1x16x1xi32>
    %15 = arith.cmpi slt, %13, %14 : vector<1x16x1xi32>
    %cst_8 = arith.constant 0.000000e+00 : f32
    %16 = vector.shape_cast %15 : vector<1x16x1xi1> to vector<1x16x1xi1>
    %17 = vector.broadcast %16 : vector<1x16x1xi1> to vector<2x16x128xi1>
    %18 = vector.broadcast %cst_8 : f32 to vector<2x16x128xf32>
    %19 = arith.select %17, %9, %18 : vector<2x16x128xi1>, vector<2x16x128xf32>
    %cst_9 = arith.constant dense<0.000000e+00> : vector<2x128xf32>
    %20 = vector.multi_reduction <add>, %19, %cst_9 [1] : vector<2x16x128xf32> to vector<2x128xf32>
    %21 = vector.shape_cast %20 : vector<2x128xf32> to vector<1x2x128xf32>
    %c0_10 = arith.constant 0 : index
    %c0_11 = arith.constant 0 : index
    %c0_12 = arith.constant 0 : index
    %22 = vector.load %arg4[%c0_10, %c0_11, %c0_12] : memref<1x2x128xf32, #tpu.memory_space<vmem>>, vector<1x2x128xf32>
    tpu.vector_store %arg4[%c0_10, %c0_11, %c0_12], %21 {strides = array<i32>} : memref<1x2x128xf32, #tpu.memory_space<vmem>>, vector<1x2x128xf32>,
    return
  }
  func.func @transform_0(%arg0: i32) -> (i32, i32, i32) {
    %c0_i32 = arith.constant 0 : i32
    %c0_i32_0 = arith.constant 0 : i32
    %c0_i32_1 = arith.constant 0 : i32
    return %c0_i32, %arg0, %c0_i32_0 : i32, i32, i32
  }
  func.func @transform_1(%arg0: i32) -> (i32, i32) {
    %c0_i32 = arith.constant 0 : i32
    %c0_i32_0 = arith.constant 0 : i32
    %c0_i32_1 = arith.constant 0 : i32
    return %c0_i32, %c0_i32_0 : i32, i32
  }
  func.func @transform_2(%arg0: i32) -> (i32, i32) {
    %c0_i32 = arith.constant 0 : i32
    %c0_i32_0 = arith.constant 0 : i32
    %c0_i32_1 = arith.constant 0 : i32
    return %c0_i32, %c0_i32_0 : i32, i32
  }
  func.func @transform_3(%arg0: i32) -> (i32, i32, i32) {
    %c0_i32 = arith.constant 0 : i32
    %c0_i32_0 = arith.constant 0 : i32
    %c0_i32_1 = arith.constant 0 : i32
    return %arg0, %c0_i32, %c0_i32_0 : i32, i32, i32
  }
}

module attributes {stable_mosaic.version = 11 : i64} {
  func.func @_head_kernel(%arg0: i32, %arg1: memref<2x128xf32, #tpu.memory_space<vmem>>, %arg2: memref<128x32xf32, #tpu.memory_space<vmem>>, %arg3: memref<1x32xf32, #tpu.memory_space<vmem>>, %arg4: memref<32x128xf32, #tpu.memory_space<vmem>>, %arg5: memref<1x128xf32, #tpu.memory_space<vmem>>, %arg6: memref<2x128xf32, #tpu.memory_space<vmem>>) attributes {dimension_semantics = [#tpu.dimension_semantics<arbitrary>], iteration_bounds = array<i64: 1>, scalar_prefetch = 0 : i64, scratch_operands = 0 : i64, tpu.core_type = #tpu.core_type<tc>, window_params = [{pipeline_mode = #tpu.pipeline_mode<synchronous>, transform_indices = @transform_0, window_bounds = array<i64: 2, 128>}, {pipeline_mode = #tpu.pipeline_mode<synchronous>, transform_indices = @transform_1, window_bounds = array<i64: 128, 32>}, {pipeline_mode = #tpu.pipeline_mode<synchronous>, transform_indices = @transform_2, window_bounds = array<i64: 1, 32>}, {pipeline_mode = #tpu.pipeline_mode<synchronous>, transform_indices = @transform_3, window_bounds = array<i64: 32, 128>}, {pipeline_mode = #tpu.pipeline_mode<synchronous>, transform_indices = @transform_4, window_bounds = array<i64: 1, 128>}, {pipeline_mode = #tpu.pipeline_mode<synchronous>, transform_indices = @transform_5, window_bounds = array<i64: 2, 128>}]} {
    %c0 = arith.constant 0 : index
    %c0_0 = arith.constant 0 : index
    %0 = vector.load %arg1[%c0, %c0_0] : memref<2x128xf32, #tpu.memory_space<vmem>>, vector<2x128xf32>
    %c0_1 = arith.constant 0 : index
    %c0_2 = arith.constant 0 : index
    %1 = vector.load %arg2[%c0_1, %c0_2] : memref<128x32xf32, #tpu.memory_space<vmem>>, vector<128x32xf32>
    %cst = arith.constant dense<0.000000e+00> : vector<2x32xf32>
    %2 = tpu.matmul %0, %1, %cst {dimension_numbers = #tpu.dot_dimension_numbers<[1], [0], [0], [1], [0, 0, 1, 1], [], []>} : vector<2x128xf32>, vector<128x32xf32>, vector<2x32xf32> -> vector<2x32xf32>
    %c0_3 = arith.constant 0 : index
    %c0_4 = arith.constant 0 : index
    %3 = vector.load %arg3[%c0_3, %c0_4] : memref<1x32xf32, #tpu.memory_space<vmem>>, vector<1x32xf32>
    %4 = vector.broadcast %3 : vector<1x32xf32> to vector<2x32xf32>
    %5 = arith.addf %2, %4 : vector<2x32xf32>
    %cst_5 = arith.constant 0.000000e+00 : f32
    %6 = vector.broadcast %cst_5 : f32 to vector<2x32xf32>
    %7 = arith.maximumf %5, %6 : vector<2x32xf32>
    %c0_6 = arith.constant 0 : index
    %c0_7 = arith.constant 0 : index
    %8 = vector.load %arg4[%c0_6, %c0_7] : memref<32x128xf32, #tpu.memory_space<vmem>>, vector<32x128xf32>
    %cst_8 = arith.constant dense<0.000000e+00> : vector<2x128xf32>
    %9 = tpu.matmul %7, %8, %cst_8 {dimension_numbers = #tpu.dot_dimension_numbers<[1], [0], [0], [1], [0, 0, 1, 1], [], []>} : vector<2x32xf32>, vector<32x128xf32>, vector<2x128xf32> -> vector<2x128xf32>
    %c0_9 = arith.constant 0 : index
    %c0_10 = arith.constant 0 : index
    %10 = vector.load %arg5[%c0_9, %c0_10] : memref<1x128xf32, #tpu.memory_space<vmem>>, vector<1x128xf32>
    %11 = vector.broadcast %10 : vector<1x128xf32> to vector<2x128xf32>
    %12 = arith.addf %9, %11 : vector<2x128xf32>
    %cst_11 = arith.constant 0.000000e+00 : f32
    %13 = vector.broadcast %cst_11 : f32 to vector<2x128xf32>
    %14 = arith.maximumf %12, %13 : vector<2x128xf32>
    %c0_12 = arith.constant 0 : index
    %c0_13 = arith.constant 0 : index
    %15 = vector.load %arg6[%c0_12, %c0_13] : memref<2x128xf32, #tpu.memory_space<vmem>>, vector<2x128xf32>
    tpu.vector_store %arg6[%c0_12, %c0_13], %14 {strides = array<i32>} : memref<2x128xf32, #tpu.memory_space<vmem>>, vector<2x128xf32>,
    return
  }
  func.func @transform_0(%arg0: i32) -> (i32, i32) {
    %c0_i32 = arith.constant 0 : i32
    %c0_i32_0 = arith.constant 0 : i32
    %c0_i32_1 = arith.constant 0 : i32
    return %c0_i32, %c0_i32_0 : i32, i32
  }
  func.func @transform_1(%arg0: i32) -> (i32, i32) {
    %c0_i32 = arith.constant 0 : i32
    %c0_i32_0 = arith.constant 0 : i32
    %c0_i32_1 = arith.constant 0 : i32
    return %c0_i32, %c0_i32_0 : i32, i32
  }
  func.func @transform_2(%arg0: i32) -> (i32, i32) {
    %c0_i32 = arith.constant 0 : i32
    %c0_i32_0 = arith.constant 0 : i32
    %c0_i32_1 = arith.constant 0 : i32
    return %c0_i32, %c0_i32_0 : i32, i32
  }
  func.func @transform_3(%arg0: i32) -> (i32, i32) {
    %c0_i32 = arith.constant 0 : i32
    %c0_i32_0 = arith.constant 0 : i32
    %c0_i32_1 = arith.constant 0 : i32
    return %c0_i32, %c0_i32_0 : i32, i32
  }
  func.func @transform_4(%arg0: i32) -> (i32, i32) {
    %c0_i32 = arith.constant 0 : i32
    %c0_i32_0 = arith.constant 0 : i32
    %c0_i32_1 = arith.constant 0 : i32
    return %c0_i32, %c0_i32_0 : i32, i32
  }
  func.func @transform_5(%arg0: i32) -> (i32, i32) {
    %c0_i32 = arith.constant 0 : i32
    %c0_i32_0 = arith.constant 0 : i32
    %c0_i32_1 = arith.constant 0 : i32
    return %c0_i32, %c0_i32_0 : i32, i32
  }
}

</mosaic_0001>

<llo_original>
// kernel: color_map_net_forward.4
$region0: #{color_map_net_forward.4}
  #allocation0 [shape = 'u32[]', space=smem, size = 0x4, offset = 0x4, fixed_abs, tag = 'smem constant byte address 0x4 - core index']
  #allocation1 [shape = 'u32[144,128]{1,0:T(1,128)}', space=vmem, size = 0x12000, scoped, tag = 'internal scratch']
  %s0 = inlined_call_operand.vmem [shape: bf16[2,16,256], index: 0, kind: input, shape index: {}]
  %s1 = inlined_call_operand.vmem [shape: bf16[256,128], index: 1, kind: input, shape index: {}]
  %s2 = inlined_call_operand.vmem [shape: f32[1,128], index: 2, kind: input, shape index: {}]
  %s3 = inlined_call_operand.vmem [shape: f32[1,2,128], index: 3, kind: output, shape index: {}]
  %s4 = sld [smem:[#allocation0]]
  $region22: #{color_map_net_forward.4} parent=0
    _
  %s6 = ssub.s32 1, %s4
  %s7 = scalar_select 0, %s6, %s4
  // Predicated region
  $region2: #{color_map_net_forward.4} parent=0 // pred_check
    _
  $region3: #{color_map_net_forward.4} parent=0 // pred_check_branch
    %9 = sbr.rel (0) target = $region5
  $region4: #{color_map_net_forward.4} parent=0 // pred_region
    _
  $region5: #{color_map_net_forward.4} parent=0 // pred_fallthru
    _
  // Predicated region
  $region6: #{color_map_net_forward.4} parent=0 // pred_check
    _
  $region7: #{color_map_net_forward.4} parent=0 // pred_check_branch
    %11 = sbr.rel (0) target = $region9
  $region8: #{color_map_net_forward.4} parent=0 // pred_region
    _
  $region9: #{color_map_net_forward.4} parent=0 // pred_fallthru
    _
  // Predicated region
  $region10: #{color_map_net_forward.4} parent=0 // pred_check
    _
  $region11: #{color_map_net_forward.4} parent=0 // pred_check_branch
    %13 = sbr.rel (0) target = $region13
  $region12: #{color_map_net_forward.4} parent=0 // pred_region
    _
  $region13: #{color_map_net_forward.4} parent=0 // pred_fallthru
    _
  %v15 = vld [vmem:[%s0] sm:$0xff]
  %v16 = vld [vmem:[%s0 + $0x8] sm:$0xff]
  %v17 = vld [vmem:[%s0 + $0x10] sm:$0xff]
  %v18 = vld [vmem:[%s0 + $0x18] sm:$0xff]
  %v19 = vld [vmem:[%s1] sm:$0xf]
  %v20 = vld [vmem:[%s1 + $0x4] sm:$0xf]
  %v21 = vld [vmem:[%s1 + $0x8] sm:$0xf]
  %v22 = vld [vmem:[%s1 + $0xc] sm:$0xf]
  %v23 = vld [vmem:[%s1 + $0x10] sm:$0xf]
  %v24 = vld [vmem:[%s1 + $0x14] sm:$0xf]
  %v25 = vld [vmem:[%s1 + $0x18] sm:$0xf]
  %v26 = vld [vmem:[%s1 + $0x1c] sm:$0xf]
  %v27 = vld [vmem:[%s1 + $0x20] sm:$0xf]
  %v28 = vld [vmem:[%s1 + $0x24] sm:$0xf]
  %v29 = vld [vmem:[%s1 + $0x28] sm:$0xf]
  %v30 = vld [vmem:[%s1 + $0x2c] sm:$0xf]
  %v31 = vld [vmem:[%s1 + $0x30] sm:$0xf]
  %v32 = vld [vmem:[%s1 + $0x34] sm:$0xf]
  %v33 = vld [vmem:[%s1 + $0x38] sm:$0xf]
  %v34 = vld [vmem:[%s1 + $0x3c] sm:$0xf]
  %v35 = vld [vmem:[%s1 + $0x40] sm:$0xf]
  %v36 = vld [vmem:[%s1 + $0x44] sm:$0xf]
  %v37 = vld [vmem:[%s1 + $0x48] sm:$0xf]
  %v38 = vld [vmem:[%s1 + $0x4c] sm:$0xf]
  %v39 = vld [vmem:[%s1 + $0x50] sm:$0xf]
  %v40 = vld [vmem:[%s1 + $0x54] sm:$0xf]
  %v41 = vld [vmem:[%s1 + $0x58] sm:$0xf]
  %v42 = vld [vmem:[%s1 + $0x5c] sm:$0xf]
  %v43 = vld [vmem:[%s1 + $0x60] sm:$0xf]
  %v44 = vld [vmem:[%s1 + $0x64] sm:$0xf]
  %v45 = vld [vmem:[%s1 + $0x68] sm:$0xf]
  %v46 = vld [vmem:[%s1 + $0x6c] sm:$0xf]
  %v47 = vld [vmem:[%s1 + $0x70] sm:$0xf]
  %v48 = vld [vmem:[%s1 + $0x74] sm:$0xf]
  %v49 = vld [vmem:[%s1 + $0x78] sm:$0xf]
  %v50 = vld [vmem:[%s1 + $0x7c] sm:$0xf]
  %v51 = vld [vmem:[%s2] sm:$0x1]
  %v53 = vlaneseq
  %v54 = vshrl.u32 %v53, 7
  %v55 = vsub.s32 0, %v54
  %v56 = vrot.slane %v51, %v55
  %v62 = vunpack.c.l.b16 %v15
  %v63 = vunpack.c.h.b16 %v15
  %v64 = vunpack.c.l.b16 %v16
  %v65 = vunpack.c.h.b16 %v16
  %v66 = vunpack.c.l.b16 %v17
  %v67 = vunpack.c.h.b16 %v17
  %v68 = vunpack.c.l.b16 %v18
  %v69 = vunpack.c.h.b16 %v18
  %v70 = vpack.c.b16 %v64, %v62
  %v71 = vpack.c.b16 %v65, %v63
  %v72 = vpack.c.b16 %v68, %v66
  %v73 = vpack.c.b16 %v69, %v67
  %v110 = vunpack.c.l.b16 %v19
  %v111 = vunpack.c.l.b16 %v20
  %v112 = vunpack.c.l.b16 %v21
  %v113 = vunpack.c.l.b16 %v22
  %v114 = vunpack.c.l.b16 %v23
  %v115 = vunpack.c.l.b16 %v24
  %v116 = vunpack.c.l.b16 %v25
  %v117 = vunpack.c.l.b16 %v26
  %v118 = vunpack.c.l.b16 %v27
  %v119 = vunpack.c.l.b16 %v28
  %v120 = vunpack.c.l.b16 %v29
  %v121 = vunpack.c.l.b16 %v30
  %v122 = vunpack.c.l.b16 %v31
  %v123 = vunpack.c.l.b16 %v32
  %v124 = vunpack.c.l.b16 %v33
  %v125 = vunpack.c.l.b16 %v34
  %v126 = vunpack.c.l.b16 %v35
  %v127 = vunpack.c.l.b16 %v36
  %v128 = vunpack.c.l.b16 %v37
  %v129 = vunpack.c.l.b16 %v38
  %v130 = vunpack.c.l.b16 %v39
  %v131 = vunpack.c.l.b16 %v40
  %v132 = vunpack.c.l.b16 %v41
  %v133 = vunpack.c.l.b16 %v42
  %v134 = vunpack.c.l.b16 %v43
  %v135 = vunpack.c.l.b16 %v44
  %v136 = vunpack.c.l.b16 %v45
  %v137 = vunpack.c.l.b16 %v46
  %v138 = vunpack.c.l.b16 %v47
  %v139 = vunpack.c.l.b16 %v48
  %v140 = vunpack.c.l.b16 %v49
  %v141 = vunpack.c.l.b16 %v50
  %v142 = vpack.c.b16 %v111, %v110
  %v143 = vpack.c.b16 %v113, %v112
  %v144 = vpack.c.b16 %v115, %v114
  %v145 = vpack.c.b16 %v117, %v116
  %v146 = vpack.c.b16 %v119, %v118
  %v147 = vpack.c.b16 %v121, %v120
  %v148 = vpack.c.b16 %v123, %v122
  %v149 = vpack.c.b16 %v125, %v124
  %v150 = vpack.c.b16 %v127, %v126
  %v151 = vpack.c.b16 %v129, %v128
  %v152 = vpack.c.b16 %v131, %v130
  %v153 = vpack.c.b16 %v133, %v132
  %v154 = vpack.c.b16 %v135, %v134
  %v155 = vpack.c.b16 %v137, %v136
  %v156 = vpack.c.b16 %v139, %v138
  %v157 = vpack.c.b16 %v141, %v140
  %174 = vmatprep.subr.bf16.mxu0 0
  %175 = vmatpush1.bf16.msra.mxu0 %v149
  %176 = vmatprep.subr.bf16.mxu0 0
  %177 = vmatpush1.bf16.msra.mxu0 %v148
  %178 = vmatprep.subr.bf16.mxu0 0
  %179 = vmatpush1.bf16.msra.mxu0 %v147
  %180 = vmatprep.subr.bf16.mxu0 0
  %181 = vmatpush1.bf16.msra.mxu0 %v146
  %182 = vmatprep.subr.bf16.mxu0 0
  %183 = vmatpush1.bf16.msra.mxu0 %v145
  %184 = vmatprep.subr.bf16.mxu0 0
  %185 = vmatpush1.bf16.msra.mxu0 %v144
  %186 = vmatprep.subr.bf16.mxu0 0
  %187 = vmatpush1.bf16.msra.mxu0 %v143
  %188 = vmatprep.subr.bf16.mxu0 0
  %189 = vmatpush1.bf16.msra.mxu0 %v142
  %190 = vmatprep.subr.bf16.mxu0 0
  %191 = vmatpush2.bf16.msra.mxu0 %v157
  %192 = vmatprep.subr.bf16.mxu0 0
  %193 = vmatpush2.bf16.msra.mxu0 %v156
  %194 = vmatprep.subr.bf16.mxu0 0
  %195 = vmatpush2.bf16.msra.mxu0 %v155
  %196 = vmatprep.subr.bf16.mxu0 0
  %197 = vmatpush2.bf16.msra.mxu0 %v154
  %198 = vmatprep.subr.bf16.mxu0 0
  %199 = vmatpush2.bf16.msra.mxu0 %v153
  %200 = vmatprep.subr.bf16.mxu0 0
  %201 = vmatpush2.bf16.msra.mxu0 %v152
  %202 = vmatprep.subr.bf16.mxu0 0
  %203 = vmatpush2.bf16.msra.mxu0 %v151
  %204 = vmatprep.subr.bf16.mxu0 0
  %205 = vmatpush2.bf16.msra.mxu0 %v150
  %206 = vmatprep.mubr.bf16.mxu0 %v71
  %207 = vmatmul.mubr.bf16.gmra.mxu0 %v70
  %v208 = vpop.f32.mrf.mxu0
  %v209 = vadd.f32 %v56, %v208
  %v210 = vpop.f32.mrf.mxu0
  %v211 = vpop.f32.mrf.mxu0
  %v212 = vadd.f32 %v56, %v211
  %v213 = vpop.f32.mrf.mxu0
  %214 = vmatprep.mubr.bf16.mxu0 %v73
  %215 = vmatmul.mubr.bf16.gmra.mxu0 %v72
  %v216 = vpop.f32.mrf.mxu0
  %v217 = vadd.f32 %v56, %v216
  %v218 = vpop.f32.mrf.mxu0
  %v219 = vpop.f32.mrf.mxu0
  %v220 = vadd.f32 %v56, %v219
  %v221 = vpop.f32.mrf.mxu0
  %222 = vdwg.mxu0
  %v223 = vmax.f32 %v209, 0.0
  %v224 = vmax.f32 %v212, 0.0
  %v225 = vmax.f32 %v217, 0.0
  %v226 = vmax.f32 %v220, 0.0
  %s227 = smul.u32 0, 16
  %v228 = vlaneseq
  %v229 = vshrl.u32 %v228, 7
  %v230 = vadd.s32 %v229, 8
  %v231 = vstv %s227
  %v232 = vadd.s32 %v231, %v229
  %v233 = vadd.s32 %v231, %v230
  %vm234 = vcmp.lt.s32.totalorder %v232, 16
  %vm235 = vcmp.lt.s32.totalorder %v233, 16
  %v236 = vsel %vm234, 1, 0
  %v237 = vsel %vm235, 1, 0
  %vm238 = vcmp.eq.s32.totalorder %v236, 1
  %vm239 = vcmp.eq.s32.totalorder %v237, 1
  %v240 = vsel %vm238, %v223, 0.0
  %v241 = vsel %vm239, %v224, 0.0
  %v242 = vsel %vm238, %v225, 0.0
  %v243 = vsel %vm239, %v226, 0.0
  %v244 = vadd.f32 %v240, %v241
  %v245 = vrot.slane %v244, 4
  %v246 = vadd.f32 %v244, %v245
  %v247 = vrot.slane %v246, 2
  %v248 = vadd.f32 %v246, %v247
  %v249 = vrot.slane %v248, 1
  %v250 = vadd.f32 %v248, %v249
  %v251 = vadd.f32 %v242, %v243
  %v252 = vrot.slane %v251, 4
  %v253 = vadd.f32 %v251, %v252
  %v254 = vrot.slane %v253, 2
  %v255 = vadd.f32 %v253, %v254
  %v256 = vrot.slane %v255, 1
  %v257 = vadd.f32 %v255, %v256
  %vm260 = vcmask 1041409
  %v261 = vsel %vm260, %v257, %v250
  %263 = vst [vmem:[%s3] sm:$0x3] %v261
  // Predicated region
  $region14: #{color_map_net_forward.4} parent=0 // pred_check
    _
  $region15: #{color_map_net_forward.4} parent=0 // pred_check_branch
    %265 = sbr.rel (0) target = $region17
  $region16: #{color_map_net_forward.4} parent=0 // pred_region
    _
  $region17: #{color_map_net_forward.4} parent=0 // pred_fallthru
    _
  // Predicated region
  $region18: #{color_map_net_forward.4} parent=0 // pred_check
    _
  $region19: #{color_map_net_forward.4} parent=0 // pred_check_branch
    %267 = sbr.rel (0) target = $region21
  $region20: #{color_map_net_forward.4} parent=0 // pred_region
    _
  $region21: #{color_map_net_forward.4} parent=0 // pred_fallthru
    _

// kernel: color_map_net_forward.3
$region0: #{color_map_net_forward.3}
  #allocation0 [shape = 'u32[]', space=smem, size = 0x4, offset = 0x4, fixed_abs, tag = 'smem constant byte address 0x4 - core index']
  #allocation1 [shape = 'u32[144,128]{1,0:T(1,128)}', space=vmem, size = 0x12000, scoped, tag = 'internal scratch']
  %s0 = inlined_call_operand.vmem [shape: bf16[128,128], index: 0, kind: input, shape index: {}]
  %s1 = inlined_call_operand.vmem [shape: bf16[128,128], index: 1, kind: input, shape index: {}]
  %s2 = inlined_call_operand.vmem [shape: f32[1,128], index: 2, kind: input, shape index: {}]
  %s3 = inlined_call_operand.vmem [shape: bf16[128,128], index: 3, kind: output, shape index: {}]
  %s4 = sld [smem:[#allocation0]]
  $region45: #{color_map_net_forward.3} parent=0
    _
  %s6 = ssub.s32 1, %s4
  %s7 = scalar_select 0, %s6, %s4
  loop: start=0, step=1, limit=4
  $region2: #{color_map_net_forward.3} parent=0 // loop_pre_header
    _
  $region3: #{color_map_net_forward.3} parent=0 // loop_header
    %s9 = sphi 0, %s13
    %p10 = scmp.ge.s32.totalorder %s9, 4
    %s19 = sphi 0, %s21
    %s22 = sphi 0, %s19
    %s23 = sphi 0, %s22
    %s39 = sphi 0, %s23
    %s43 = sphi 0, %s43
    %s45 = sphi 0, %s43
    %s46 = sphi 0, %s45
    %s60 = sphi 0, %s46
    %s64 = sphi 0, %s64
    %s66 = sphi 0, %s64
    %s67 = sphi 0, %s66
    %s81 = sphi 0, %s67
    %s87 = sphi 0, %s89
    %s90 = sphi 0, %s87
    %s91 = sphi 0, %s90
    %s107 = sphi 0, %s91
  $region4: #{color_map_net_forward.3} parent=0 // loop_header_branch
    %12 = sbr.rel (%p10) target = $region8
  $region5: #{color_map_net_forward.3} parent=0 // loop_body
    %s14 = ssub.s32 %s9, 1
    %s15 = ssub.s32 %s9, 2
    %s16 = sadd.s32 %s9, 1
    %s17 = ssub.s32 %s9, %s16
    %p18 = scmp.eq.s32.totalorder %s17, 0
    %s20 = sadd.s32 %s19, 1
    %s21 = scalar_select %p18, %s19, %s20
    %p24 = pneg %p18
    %p25 = scmp.eq.s32.totalorder %s9, 1
    %p26 = por %p24, %p25
    %p27 = scmp.ne.s32.totalorder %s19, %s22
    %p28 = scmp.eq.s32.totalorder %s9, 0
    %p29 = por %p27, %p28
    %p30 = scmp.ne.s32.totalorder %s19, %s22
    %p31 = scmp.eq.s32.totalorder %s14, 1
    %p32 = por %p30, %p31
    %p33 = scmp.ne.s32.totalorder %s22, %s23
    %p34 = scmp.eq.s32.totalorder %s14, 0
    %p35 = por %p33, %p34
    %p36 = scmp.ne.s32.totalorder %s22, %s23
    %p37 = scmp.eq.s32.totalorder %s15, 1
    %p38 = por %p36, %p37
    %p40 = scmp.ne.s32.totalorder %s23, %s39
    %p41 = scmp.eq.s32.totalorder %s15, 0
    %p42 = por %p40, %p41
    %s44 = sadd.s32 %s43, 1
    %p47 = scmp.eq.s32.totalorder %s9, 1
    %p48 = scmp.ne.s32.totalorder %s43, %s45
    %p49 = scmp.eq.s32.totalorder %s9, 0
    %p50 = por %p48, %p49
    %p51 = scmp.ne.s32.totalorder %s43, %s45
    %p52 = scmp.eq.s32.totalorder %s14, 1
    %p53 = por %p51, %p52
    %p54 = scmp.ne.s32.totalorder %s45, %s46
    %p55 = scmp.eq.s32.totalorder %s14, 0
    %p56 = por %p54, %p55
    %p57 = scmp.ne.s32.totalorder %s45, %s46
    %p58 = scmp.eq.s32.totalorder %s15, 1
    %p59 = por %p57, %p58
    %p61 = scmp.ne.s32.totalorder %s46, %s60
    %p62 = scmp.eq.s32.totalorder %s15, 0
    %p63 = por %p61, %p62
    %s65 = sadd.s32 %s64, 1
    %p68 = scmp.eq.s32.totalorder %s9, 1
    %p69 = scmp.ne.s32.totalorder %s64, %s66
    %p70 = scmp.eq.s32.totalorder %s9, 0
    %p71 = por %p69, %p70
    %p72 = scmp.ne.s32.totalorder %s64, %s66
    %p73 = scmp.eq.s32.totalorder %s14, 1
    %p74 = por %p72, %p73
    %p75 = scmp.ne.s32.totalorder %s66, %s67
    %p76 = scmp.eq.s32.totalorder %s14, 0
    %p77 = por %p75, %p76
    %p78 = scmp.ne.s32.totalorder %s66, %s67
    %p79 = scmp.eq.s32.totalorder %s15, 1
    %p80 = por %p78, %p79
    %p82 = scmp.ne.s32.totalorder %s67, %s81
    %p83 = scmp.eq.s32.totalorder %s15, 0
    %p84 = por %p82, %p83
    %s85 = ssub.s32 %s9, %s16
    %p86 = scmp.eq.s32.totalorder %s85, 0
    %s88 = sadd.s32 %s87, 1
    %s89 = scalar_select %p86, %s87, %s88
    %p92 = pneg %p86
    %p93 = scmp.eq.s32.totalorder %s9, 1
    %p94 = por %p92, %p93
    %p95 = scmp.ne.s32.totalorder %s87, %s90
    %p96 = scmp.eq.s32.totalorder %s9, 0
    %p97 = por %p95, %p96
    %p98 = scmp.ne.s32.totalorder %s87, %s90
    %p99 = scmp.eq.s32.totalorder %s14, 1
    %p100 = por %p98, %p99
    %p101 = scmp.ne.s32.totalorder %s90, %s91
    %p102 = scmp.eq.s32.totalorder %s14, 0
    %p103 = por %p101, %p102
    %p104 = scmp.ne.s32.totalorder %s90, %s91
    %p105 = scmp.eq.s32.totalorder %s15, 1
    %p106 = por %p104, %p105
    %p108 = scmp.ne.s32.totalorder %s91, %s107
    %p109 = scmp.eq.s32.totalorder %s15, 0
    %p110 = por %p108, %p109
    %p111 = scmp.le.s32.totalorder 1, %s9
    %p112 = scmp.lt.s32.totalorder %s9, 3
    %p113 = pnand %p111, %p112
    %p114 = pneg %p113
    // Predicated region
    $region9: #{color_map_net_forward.3} parent=5 // pred_check
      _
    $region10: #{color_map_net_forward.3} parent=5 // pred_check_branch
      %116 = sbr.rel (%p113) target = $region12
    $region11: #{color_map_net_forward.3} parent=5 // pred_region
      %s117 = ssub.s32 %s9, 1
      // Predicated region
      $region13: #{color_map_net_forward.3} parent=11 // pred_check
        %p118 = pneg %p56
      $region14: #{color_map_net_forward.3} parent=11 // pred_check_branch
        %120 = sbr.rel (%p118) target = $region16
      $region15: #{color_map_net_forward.3} parent=11 // pred_region
        _
      $region16: #{color_map_net_forward.3} parent=11 // pred_fallthru
        _
      // Predicated region
      $region17: #{color_map_net_forward.3} parent=11 // pred_check
        %p121 = pneg %p77
      $region18: #{color_map_net_forward.3} parent=11 // pred_check_branch
        %123 = sbr.rel (%p121) target = $region20
      $region19: #{color_map_net_forward.3} parent=11 // pred_region
        _
      $region20: #{color_map_net_forward.3} parent=11 // pred_fallthru
        _
    $region12: #{color_map_net_forward.3} parent=5 // pred_fallthru
      _
    %p124 = scmp.lt.s32.totalorder %s9, 2
    // Predicated region
    $region21: #{color_map_net_forward.3} parent=5 // pred_check
      %p125 = pneg %p124
    $region22: #{color_map_net_forward.3} parent=5 // pred_check_branch
      %127 = sbr.rel (%p125) target = $region24
    $region23: #{color_map_net_forward.3} parent=5 // pred_region
      // Predicated region
      $region25: #{color_map_net_forward.3} parent=23 // pred_check
        %p128 = pneg %p29
      $region26: #{color_map_net_forward.3} parent=23 // pred_check_branch
        %130 = sbr.rel (%p128) target = $region28
      $region27: #{color_map_net_forward.3} parent=23 // pred_region
        %s131 = smul.u32 8, %s9
        %p132 = scmp.lt.s32.totalorder %s131, 15
        %s133 = scalar_select %p132, %s131, 15
        %s134 = smul.addr %s133, 4
        %s135 = scalar_lea.vmem %s0, %s134
        %s136 = smul.u32 8, %s9
      $region28: #{color_map_net_forward.3} parent=23 // pred_fallthru
        _
    $region24: #{color_map_net_forward.3} parent=5 // pred_fallthru
      _
    %p137 = scmp.le.s32.totalorder 1, %s9
    %p138 = scmp.lt.s32.totalorder %s9, 3
    %p139 = pnand %p137, %p138
    %p140 = pneg %p139
    // Predicated region
    $region29: #{color_map_net_forward.3} parent=5 // pred_check
      _
    $region30: #{color_map_net_forward.3} parent=5 // pred_check_branch
      %142 = sbr.rel (%p139) target = $region32
    $region31: #{color_map_net_forward.3} parent=5 // pred_region
      %s143 = ssub.s32 %s9, 1
      %s144 = smul.u32 8, %s14
      %p145 = scmp.lt.s32.totalorder %s144, 15
      %s146 = scalar_select %p145, %s144, 15
      %s147 = smul.addr %s146, 4
      %s148 = scalar_lea.vmem %s0, %s147
      %p149 = pneg %p35
      %p150 = pneg %p32
      %p151 = pneg %p56
      %p152 = pneg %p53
      %p153 = pneg %p77
      %p154 = pneg %p74
      %p155 = pneg %p103
      %p156 = pneg %p100
      %s157 = smul.u32 8, %s14
      %p158 = scmp.lt.s32.totalorder %s157, 15
      %s159 = scalar_select %p158, %s157, 15
      %s160 = smul.addr %s159, 4
      %s161 = scalar_lea.vmem %s3, %s160
      %s162 = smul.u32 8, %s14
      %p163 = scmp.lt.s32.totalorder %s162, 15
      %s164 = scalar_select %p163, %s162, 15
      %s165 = smul.addr %s164, 4
      %s166 = scalar_lea.vmem %s0, %s165
      %s167 = smul.u32 8, %s14
      %s168 = smul.u32 8, %s14
      %p169 = scmp.lt.s32.totalorder %s168, 15
      %s170 = scalar_select %p169, %s168, 15
      %s171 = smul.addr %s170, 4
      %s172 = scalar_lea.vmem %s3, %s171
      %s173 = smul.u32 8, %s14
      %v175 = vld [vmem:[%s166] sm:$0xf]
      %v176 = vld [vmem:[%s166 + $0x4] sm:$0xf]
      %v177 = vld [vmem:[%s166 + $0x8] sm:$0xf]
      %v178 = vld [vmem:[%s166 + $0xc] sm:$0xf]
      %v179 = vld [vmem:[%s166 + $0x10] sm:$0xf]
      %v180 = vld [vmem:[%s166 + $0x14] sm:$0xf]
      %v181 = vld [vmem:[%s166 + $0x18] sm:$0xf]
      %v182 = vld [vmem:[%s166 + $0x1c] sm:$0xf]
      %v183 = vld [vmem:[%s1] sm:$0xf]
      %v184 = vld [vmem:[%s1 + $0x4] sm:$0xf]
      %v185 = vld [vmem:[%s1 + $0x8] sm:$0xf]
      %v186 = vld [vmem:[%s1 + $0xc] sm:$0xf]
      %v187 = vld [vmem:[%s1 + $0x10] sm:$0xf]
      %v188 = vld [vmem:[%s1 + $0x14] sm:$0xf]
      %v189 = vld [vmem:[%s1 + $0x18] sm:$0xf]
      %v190 = vld [vmem:[%s1 + $0x1c] sm:$0xf]
      %v191 = vld [vmem:[%s1 + $0x20] sm:$0xf]
      %v192 = vld [vmem:[%s1 + $0x24] sm:$0xf]
      %v193 = vld [vmem:[%s1 + $0x28] sm:$0xf]
      %v194 = vld [vmem:[%s1 + $0x2c] sm:$0xf]
      %v195 = vld [vmem:[%s1 + $0x30] sm:$0xf]
      %v196 = vld [vmem:[%s1 + $0x34] sm:$0xf]
      %v197 = vld [vmem:[%s1 + $0x38] sm:$0xf]
      %v198 = vld [vmem:[%s1 + $0x3c] sm:$0xf]
      %v199 = vld [vmem:[%s2] sm:$0x1]
      %v201 = vlaneseq
      %v202 = vshrl.u32 %v201, 7
      %v203 = vsub.s32 0, %v202
      %v204 = vrot.slane %v199, %v203
      %v214 = vunpack.c.l.b16 %v175
      %v215 = vunpack.c.l.b16 %v176
      %v216 = vunpack.c.l.b16 %v177
      %v217 = vunpack.c.l.b16 %v178
      %v218 = vunpack.c.l.b16 %v179
      %v219 = vunpack.c.l.b16 %v180
      %v220 = vunpack.c.l.b16 %v181
      %v221 = vunpack.c.l.b16 %v182
      %v222 = vpack.c.b16 %v215, %v214
      %v223 = vpack.c.b16 %v217, %v216
      %v224 = vpack.c.b16 %v219, %v218
      %v225 = vpack.c.b16 %v221, %v220
      %v246 = vunpack.c.l.b16 %v183
      %v247 = vunpack.c.l.b16 %v184
      %v248 = vunpack.c.l.b16 %v185
      %v249 = vunpack.c.l.b16 %v186
      %v250 = vunpack.c.l.b16 %v187
      %v251 = vunpack.c.l.b16 %v188
      %v252 = vunpack.c.l.b16 %v189
      %v253 = vunpack.c.l.b16 %v190
      %v254 = vunpack.c.l.b16 %v191
      %v255 = vunpack.c.l.b16 %v192
      %v256 = vunpack.c.l.b16 %v193
      %v257 = vunpack.c.l.b16 %v194
      %v258 = vunpack.c.l.b16 %v195
      %v259 = vunpack.c.l.b16 %v196
      %v260 = vunpack.c.l.b16 %v197
      %v261 = vunpack.c.l.b16 %v198
      %v262 = vpack.c.b16 %v247, %v246
      %v263 = vpack.c.b16 %v249, %v248
      %v264 = vpack.c.b16 %v251, %v250
      %v265 = vpack.c.b16 %v253, %v252
      %v266 = vpack.c.b16 %v255, %v254
      %v267 = vpack.c.b16 %v257, %v256
      %v268 = vpack.c.b16 %v259, %v258
      %v269 = vpack.c.b16 %v261, %v260
      %278 = vmatprep.subr.bf16.mxu0 0
      %279 = vmatpush1.bf16.msra.mxu0 %v269
      %280 = vmatprep.subr.bf16.mxu0 0
      %281 = vmatpush1.bf16.msra.mxu0 %v268
      %282 = vmatprep.subr.bf16.mxu0 0
      %283 = vmatpush1.bf16.msra.mxu0 %v267
      %284 = vmatprep.subr.bf16.mxu0 0
      %285 = vmatpush1.bf16.msra.mxu0 %v266
      %286 = vmatprep.subr.bf16.mxu0 0
      %287 = vmatpush1.bf16.msra.mxu0 %v265
      %288 = vmatprep.subr.bf16.mxu0 0
      %289 = vmatpush1.bf16.msra.mxu0 %v264
      %290 = vmatprep.subr.bf16.mxu0 0
      %291 = vmatpush1.bf16.msra.mxu0 %v263
      %292 = vmatprep.subr.bf16.mxu0 0
      %293 = vmatpush1.bf16.msra.mxu0 %v262
      %294 = vmatprep.subr.bf16.mxu0 0
      %295 = vmatpush2.bf16.msra.mxu0 0
      %296 = vmatprep.subr.bf16.mxu0 0
      %297 = vmatpush2.bf16.msra.mxu0 0
      %298 = vmatprep.subr.bf16.mxu0 0
      %299 = vmatpush2.bf16.msra.mxu0 0
      %300 = vmatprep.subr.bf16.mxu0 0
      %301 = vmatpush2.bf16.msra.mxu0 0
      %302 = vmatprep.subr.bf16.mxu0 0
      %303 = vmatpush2.bf16.msra.mxu0 0
      %304 = vmatprep.subr.bf16.mxu0 0
      %305 = vmatpush2.bf16.msra.mxu0 0
      %306 = vmatprep.subr.bf16.mxu0 0
      %307 = vmatpush2.bf16.msra.mxu0 0
      %308 = vmatprep.subr.bf16.mxu0 0
      %309 = vmatpush2.bf16.msra.mxu0 0
      %310 = vmatprep.mubr.bf16.mxu0 0
      %311 = vmatmul.mubr.bf16.gmra.mxu0 %v222
      %v312 = vpop.f32.mrf.mxu0
      %v313 = vadd.f32 %v204, %v312
      %v314 = vpop.f32.mrf.mxu0
      %v315 = vpop.f32.mrf.mxu0
      %v316 = vadd.f32 %v204, %v315
      %v317 = vpop.f32.mrf.mxu0
      %318 = vmatprep.mubr.bf16.mxu0 0
      %319 = vmatmul.mubr.bf16.gmra.mxu0 %v223
      %v320 = vpop.f32.mrf.mxu0
      %v321 = vadd.f32 %v204, %v320
      %v322 = vpop.f32.mrf.mxu0
      %v323 = vpop.f32.mrf.mxu0
      %v324 = vadd.f32 %v204, %v323
      %v325 = vpop.f32.mrf.mxu0
      %326 = vmatprep.mubr.bf16.mxu0 0
      %327 = vmatmul.mubr.bf16.gmra.mxu0 %v224
      %v328 = vpop.f32.mrf.mxu0
      %v329 = vadd.f32 %v204, %v328
      %v330 = vpop.f32.mrf.mxu0
      %v331 = vpop.f32.mrf.mxu0
      %v332 = vadd.f32 %v204, %v331
      %v333 = vpop.f32.mrf.mxu0
      %334 = vmatprep.mubr.bf16.mxu0 0
      %335 = vmatmul.mubr.bf16.gmra.mxu0 %v225
      %v336 = vpop.f32.mrf.mxu0
      %v337 = vadd.f32 %v204, %v336
      %v338 = vpop.f32.mrf.mxu0
      %v339 = vpop.f32.mrf.mxu0
      %v340 = vadd.f32 %v204, %v339
      %v341 = vpop.f32.mrf.mxu0
      %342 = vdwg.mxu0
      %v343 = vmax.f32 %v313, 0.0
      %v344 = vmax.f32 %v316, 0.0
      %v345 = vmax.f32 %v321, 0.0
      %v346 = vmax.f32 %v324, 0.0
      %v347 = vmax.f32 %v329, 0.0
      %v348 = vmax.f32 %v332, 0.0
      %v349 = vmax.f32 %v337, 0.0
      %v350 = vmax.f32 %v340, 0.0
      %v351 = vpack.c.bf16 %v344, %v343
      %v352 = vpack.c.bf16 %v346, %v345
      %v353 = vpack.c.bf16 %v348, %v347
      %v354 = vpack.c.bf16 %v350, %v349
      %v359 = vunpack.c.l.b16 %v351
      %v360 = vunpack.c.h.b16 %v351
      %v361 = vunpack.c.l.b16 %v352
      %v362 = vunpack.c.h.b16 %v352
      %v363 = vunpack.c.l.b16 %v353
      %v364 = vunpack.c.h.b16 %v353
      %v365 = vunpack.c.l.b16 %v354
      %v366 = vunpack.c.h.b16 %v354
      %v367 = vpack.c.b16 %v359, %v359
      %v368 = vpack.c.b16 %v360, %v360
      %v369 = vpack.c.b16 %v361, %v361
      %v370 = vpack.c.b16 %v362, %v362
      %v371 = vpack.c.b16 %v363, %v363
      %v372 = vpack.c.b16 %v364, %v364
      %v373 = vpack.c.b16 %v365, %v365
      %v374 = vpack.c.b16 %v366, %v366
      %383 = vst [vmem:[%s172] sm:$0xf] %v367
      %384 = vst [vmem:[%s172 + $0x4] sm:$0xf] %v368
      %385 = vst [vmem:[%s172 + $0x8] sm:$0xf] %v369
      %386 = vst [vmem:[%s172 + $0xc] sm:$0xf] %v370
      %387 = vst [vmem:[%s172 + $0x10] sm:$0xf] %v371
      %388 = vst [vmem:[%s172 + $0x14] sm:$0xf] %v372
      %389 = vst [vmem:[%s172 + $0x18] sm:$0xf] %v373
      %390 = vst [vmem:[%s172 + $0x1c] sm:$0xf] %v374
      %s391 = smul.u32 8, %s14
      %p392 = scmp.lt.s32.totalorder %s391, 15
      %s393 = scalar_select %p392, %s391, 15
      %s394 = smul.addr %s393, 4
      %s395 = scalar_lea.vmem %s3, %s394
      // Predicated region
      $region33: #{color_map_net_forward.3} parent=31 // pred_check
        %p396 = pneg %p100
      $region34: #{color_map_net_forward.3} parent=31 // pred_check_branch
        %398 = sbr.rel (%p396) target = $region36
      $region35: #{color_map_net_forward.3} parent=31 // pred_region
        %s399 = smul.u32 8, %s14
      $region36: #{color_map_net_forward.3} parent=31 // pred_fallthru
        _
    $region32: #{color_map_net_forward.3} parent=5 // pred_fallthru
      _
    %p400 = scmp.le.s32.totalorder 2, %s9
    // Predicated region
    $region37: #{color_map_net_forward.3} parent=5 // pred_check
      %p401 = pneg %p400
    $region38: #{color_map_net_forward.3} parent=5 // pred_check_branch
      %403 = sbr.rel (%p401) target = $region40
    $region39: #{color_map_net_forward.3} parent=5 // pred_region
      %s404 = ssub.s32 %s9, 2
      // Predicated region
      $region41: #{color_map_net_forward.3} parent=39 // pred_check
        %p405 = pneg %p106
      $region42: #{color_map_net_forward.3} parent=39 // pred_check_branch
        %407 = sbr.rel (%p405) target = $region44
      $region43: #{color_map_net_forward.3} parent=39 // pred_region
        %s408 = smul.u32 8, %s15
        %p409 = scmp.lt.s32.totalorder %s408, 15
        %s410 = scalar_select %p409, %s408, 15
        %s411 = smul.addr %s410, 4
        %s412 = scalar_lea.vmem %s3, %s411
      $region44: #{color_map_net_forward.3} parent=39 // pred_fallthru
        _
    $region40: #{color_map_net_forward.3} parent=5 // pred_fallthru
      _
  $region6: #{color_map_net_forward.3} parent=0 // loop_footer
    %s13 = sadd.s32 1, %s9
  $region7: #{color_map_net_forward.3} parent=0 // loop_footer_branch
    %8 = sbr.rel target = $region3
  $region8: #{color_map_net_forward.3} parent=0 // loop_exit
    _

// kernel: color_map_net_forward.5
$region0: #{color_map_net_forward.5}
  #allocation0 [shape = 'u32[]', space=smem, size = 0x4, offset = 0x4, fixed_abs, tag = 'smem constant byte address 0x4 - core index']
  #allocation1 [shape = 'u32[144,128]{1,0:T(1,128)}', space=vmem, size = 0x12000, scoped, tag = 'internal scratch']
  %s0 = inlined_call_operand.vmem [shape: f32[2,128], index: 0, kind: input, shape index: {}]
  %s1 = inlined_call_operand.vmem [shape: f32[128,32], index: 1, kind: input, shape index: {}]
  %s2 = inlined_call_operand.vmem [shape: f32[1,32], index: 2, kind: input, shape index: {}]
  %s3 = inlined_call_operand.vmem [shape: f32[32,128], index: 3, kind: input, shape index: {}]
  %s4 = inlined_call_operand.vmem [shape: f32[1,128], index: 4, kind: input, shape index: {}]
  %s5 = inlined_call_operand.vmem [shape: f32[2,128], index: 5, kind: output, shape index: {}]
  %s6 = sld [smem:[#allocation0]]
  $region30: #{color_map_net_forward.5} parent=0
    _
  %s8 = ssub.s32 1, %s6
  %s9 = scalar_select 0, %s8, %s6
  // Predicated region
  $region2: #{color_map_net_forward.5} parent=0 // pred_check
    _
  $region3: #{color_map_net_forward.5} parent=0 // pred_check_branch
    %11 = sbr.rel (0) target = $region5
  $region4: #{color_map_net_forward.5} parent=0 // pred_region
    _
  $region5: #{color_map_net_forward.5} parent=0 // pred_fallthru
    _
  // Predicated region
  $region6: #{color_map_net_forward.5} parent=0 // pred_check
    _
  $region7: #{color_map_net_forward.5} parent=0 // pred_check_branch
    %13 = sbr.rel (0) target = $region9
  $region8: #{color_map_net_forward.5} parent=0 // pred_region
    _
  $region9: #{color_map_net_forward.5} parent=0 // pred_fallthru
    _
  // Predicated region
  $region10: #{color_map_net_forward.5} parent=0 // pred_check
    _
  $region11: #{color_map_net_forward.5} parent=0 // pred_check_branch
    %15 = sbr.rel (0) target = $region13
  $region12: #{color_map_net_forward.5} parent=0 // pred_region
    _
  $region13: #{color_map_net_forward.5} parent=0 // pred_fallthru
    _
  // Predicated region
  $region14: #{color_map_net_forward.5} parent=0 // pred_check
    _
  $region15: #{color_map_net_forward.5} parent=0 // pred_check_branch
    %17 = sbr.rel (0) target = $region17
  $region16: #{color_map_net_forward.5} parent=0 // pred_region
    _
  $region17: #{color_map_net_forward.5} parent=0 // pred_fallthru
    _
  // Predicated region
  $region18: #{color_map_net_forward.5} parent=0 // pred_check
    _
  $region19: #{color_map_net_forward.5} parent=0 // pred_check_branch
    %19 = sbr.rel (0) target = $region21
  $region20: #{color_map_net_forward.5} parent=0 // pred_region
    _
  $region21: #{color_map_net_forward.5} parent=0 // pred_fallthru
    _
  %v20 = vld [vmem:[%s0] sm:$0x3]
  %v21 = vld [vmem:[%s1] sm:$0xff]
  %v22 = vld [vmem:[%s1 + $0x8] sm:$0xff]
  %v23 = vld [vmem:[%s1 + $0x10] sm:$0xff]
  %v24 = vld [vmem:[%s1 + $0x18] sm:$0xff]
  %v25 = vld [vmem:[%s1 + $0x20] sm:$0xff]
  %v26 = vld [vmem:[%s1 + $0x28] sm:$0xff]
  %v27 = vld [vmem:[%s1 + $0x30] sm:$0xff]
  %v28 = vld [vmem:[%s1 + $0x38] sm:$0xff]
  %v29 = vld [vmem:[%s1 + $0x40] sm:$0xff]
  %v30 = vld [vmem:[%s1 + $0x48] sm:$0xff]
  %v31 = vld [vmem:[%s1 + $0x50] sm:$0xff]
  %v32 = vld [vmem:[%s1 + $0x58] sm:$0xff]
  %v33 = vld [vmem:[%s1 + $0x60] sm:$0xff]
  %v34 = vld [vmem:[%s1 + $0x68] sm:$0xff]
  %v35 = vld [vmem:[%s1 + $0x70] sm:$0xff]
  %v36 = vld [vmem:[%s1 + $0x78] sm:$0xff]
  %v37 = vld [vmem:[%s2] sm:$0x1]
  %v39 = vlaneseq
  %v40 = vshrl.u32 %v39, 7
  %v41 = vsub.s32 0, %v40
  %v42 = vrot.slane %v37, %v41
  %44 = vmatprep.subr.mxu0 0.0
  %45 = vmatpush1.msra.mxu0 %v36
  %46 = vmatprep.subr.mxu0 0.0
  %47 = vmatpush1.msra.mxu0 %v35
  %48 = vmatprep.subr.mxu0 0.0
  %49 = vmatpush1.msra.mxu0 %v34
  %50 = vmatprep.subr.mxu0 0.0
  %51 = vmatpush1.msra.mxu0 %v33
  %52 = vmatprep.subr.mxu0 0.0
  %53 = vmatpush1.msra.mxu0 %v32
  %54 = vmatprep.subr.mxu0 0.0
  %55 = vmatpush1.msra.mxu0 %v31
  %56 = vmatprep.subr.mxu0 0.0
  %57 = vmatpush1.msra.mxu0 %v30
  %58 = vmatprep.subr.mxu0 0.0
  %59 = vmatpush1.msra.mxu0 %v29
  %60 = vmatprep.subr.mxu0 0.0
  %61 = vmatpush1.msra.mxu0 %v28
  %62 = vmatprep.subr.mxu0 0.0
  %63 = vmatpush1.msra.mxu0 %v27
  %64 = vmatprep.subr.mxu0 0.0
  %65 = vmatpush1.msra.mxu0 %v26
  %66 = vmatprep.subr.mxu0 0.0
  %67 = vmatpush1.msra.mxu0 %v25
  %68 = vmatprep.subr.mxu0 0.0
  %69 = vmatpush1.msra.mxu0 %v24
  %70 = vmatprep.subr.mxu0 0.0
  %71 = vmatpush1.msra.mxu0 %v23
  %72 = vmatprep.subr.mxu0 0.0
  %73 = vmatpush1.msra.mxu0 %v22
  %74 = vmatprep.subr.mxu0 0.0
  %75 = vmatpush1.msra.mxu0 %v21
  %76 = vmatprep.subr.mxu0 0.0
  %77 = vmatpush2.msra.mxu0 0.0
  %78 = vmatprep.subr.mxu0 0.0
  %79 = vmatpush2.msra.mxu0 0.0
  %80 = vmatprep.subr.mxu0 0.0
  %81 = vmatpush2.msra.mxu0 0.0
  %82 = vmatprep.subr.mxu0 0.0
  %83 = vmatpush2.msra.mxu0 0.0
  %84 = vmatprep.subr.mxu0 0.0
  %85 = vmatpush2.msra.mxu0 0.0
  %86 = vmatprep.subr.mxu0 0.0
  %87 = vmatpush2.msra.mxu0 0.0
  %88 = vmatprep.subr.mxu0 0.0
  %89 = vmatpush2.msra.mxu0 0.0
  %90 = vmatprep.subr.mxu0 0.0
  %91 = vmatpush2.msra.mxu0 0.0
  %92 = vmatprep.subr.mxu0 0.0
  %93 = vmatpush2.msra.mxu0 0.0
  %94 = vmatprep.subr.mxu0 0.0
  %95 = vmatpush2.msra.mxu0 0.0
  %96 = vmatprep.subr.mxu0 0.0
  %97 = vmatpush2.msra.mxu0 0.0
  %98 = vmatprep.subr.mxu0 0.0
  %99 = vmatpush2.msra.mxu0 0.0
  %100 = vmatprep.subr.mxu0 0.0
  %101 = vmatpush2.msra.mxu0 0.0
  %102 = vmatprep.subr.mxu0 0.0
  %103 = vmatpush2.msra.mxu0 0.0
  %104 = vmatprep.subr.mxu0 0.0
  %105 = vmatpush2.msra.mxu0 0.0
  %106 = vmatprep.subr.mxu0 0.0
  %107 = vmatpush2.msra.mxu0 0.0
  %108 = vmatprep.mubr.f32.mxu0 0.0
  %109 = vmatmul.mubr.f32.gmra.mxu0 %v20
  %v110 = vpop.f32.mrf.mxu0
  %v111 = vadd.f32 %v42, %v110
  %v112 = vpop.f32.mrf.mxu0
  %113 = vdwg.mxu0
  %v114 = vmax.f32 %v111, 0.0
  %v115 = vld [vmem:[%s3] sm:$0xff]
  %v116 = vld [vmem:[%s3 + $0x8] sm:$0xff]
  %v117 = vld [vmem:[%s3 + $0x10] sm:$0xff]
  %v118 = vld [vmem:[%s3 + $0x18] sm:$0xff]
  %v119 = vld [vmem:[%s4] sm:$0x1]
  %v121 = vlaneseq
  %v122 = vshrl.u32 %v121, 7
  %v123 = vsub.s32 0, %v122
  %v124 = vrot.slane %v119, %v123
  %vm126 = vcmask 261120
  %v128 = vsel %vm126, %v114, 0
  %130 = vmatprep.subr.mxu0 0.0
  %131 = vmatpush1.msra.mxu0 0.0
  %132 = vmatprep.subr.mxu0 0.0
  %133 = vmatpush1.msra.mxu0 0.0
  %134 = vmatprep.subr.mxu0 0.0
  %135 = vmatpush1.msra.mxu0 0.0
  %136 = vmatprep.subr.mxu0 0.0
  %137 = vmatpush1.msra.mxu0 0.0
  %138 = vmatprep.subr.mxu0 0.0
  %139 = vmatpush1.msra.mxu0 0.0
  %140 = vmatprep.subr.mxu0 0.0
  %141 = vmatpush1.msra.mxu0 0.0
  %142 = vmatprep.subr.mxu0 0.0
  %143 = vmatpush1.msra.mxu0 0.0
  %144 = vmatprep.subr.mxu0 0.0
  %145 = vmatpush1.msra.mxu0 0.0
  %146 = vmatprep.subr.mxu0 0.0
  %147 = vmatpush1.msra.mxu0 0.0
  %148 = vmatprep.subr.mxu0 0.0
  %149 = vmatpush1.msra.mxu0 0.0
  %150 = vmatprep.subr.mxu0 0.0
  %151 = vmatpush1.msra.mxu0 0.0
  %152 = vmatprep.subr.mxu0 0.0
  %153 = vmatpush1.msra.mxu0 0.0
  %154 = vmatprep.subr.mxu0 0.0
  %155 = vmatpush1.msra.mxu0 %v118
  %156 = vmatprep.subr.mxu0 0.0
  %157 = vmatpush1.msra.mxu0 %v117
  %158 = vmatprep.subr.mxu0 0.0
  %159 = vmatpush1.msra.mxu0 %v116
  %160 = vmatprep.subr.mxu0 0.0
  %161 = vmatpush1.msra.mxu0 %v115
  %162 = vmatprep.subr.mxu0 0.0
  %163 = vmatpush2.msra.mxu0 0.0
  %164 = vmatprep.subr.mxu0 0.0
  %165 = vmatpush2.msra.mxu0 0.0
  %166 = vmatprep.subr.mxu0 0.0
  %167 = vmatpush2.msra.mxu0 0.0
  %168 = vmatprep.subr.mxu0 0.0
  %169 = vmatpush2.msra.mxu0 0.0
  %170 = vmatprep.subr.mxu0 0.0
  %171 = vmatpush2.msra.mxu0 0.0
  %172 = vmatprep.subr.mxu0 0.0
  %173 = vmatpush2.msra.mxu0 0.0
  %174 = vmatprep.subr.mxu0 0.0
  %175 = vmatpush2.msra.mxu0 0.0
  %176 = vmatprep.subr.mxu0 0.0
  %177 = vmatpush2.msra.mxu0 0.0
  %178 = vmatprep.subr.mxu0 0.0
  %179 = vmatpush2.msra.mxu0 0.0
  %180 = vmatprep.subr.mxu0 0.0
  %181 = vmatpush2.msra.mxu0 0.0
  %182 = vmatprep.subr.mxu0 0.0
  %183 = vmatpush2.msra.mxu0 0.0
  %184 = vmatprep.subr.mxu0 0.0
  %185 = vmatpush2.msra.mxu0 0.0
  %186 = vmatprep.subr.mxu0 0.0
  %187 = vmatpush2.msra.mxu0 0.0
  %188 = vmatprep.subr.mxu0 0.0
  %189 = vmatpush2.msra.mxu0 0.0
  %190 = vmatprep.subr.mxu0 0.0
  %191 = vmatpush2.msra.mxu0 0.0
  %192 = vmatprep.subr.mxu0 0.0
  %193 = vmatpush2.msra.mxu0 0.0
  %194 = vmatprep.mubr.f32.mxu0 0.0
  %195 = vmatmul.mubr.f32.gmra.mxu0 %v128
  %v196 = vpop.f32.mrf.mxu0
  %v197 = vadd.f32 %v124, %v196
  %v198 = vpop.f32.mrf.mxu0
  %199 = vdwg.mxu0
  %v200 = vmax.f32 %v197, 0.0
  %201 = vst [vmem:[%s5] sm:$0x3] %v200
  // Predicated region
  $region22: #{color_map_net_forward.5} parent=0 // pred_check
    _
  $region23: #{color_map_net_forward.5} parent=0 // pred_check_branch
    %203 = sbr.rel (0) target = $region25
  $region24: #{color_map_net_forward.5} parent=0 // pred_region
    _
  $region25: #{color_map_net_forward.5} parent=0 // pred_fallthru
    _
  // Predicated region
  $region26: #{color_map_net_forward.5} parent=0 // pred_check
    _
  $region27: #{color_map_net_forward.5} parent=0 // pred_check_branch
    %205 = sbr.rel (0) target = $region29
  $region28: #{color_map_net_forward.5} parent=0 // pred_region
    _
  $region29: #{color_map_net_forward.5} parent=0 // pred_fallthru
    _

</llo_original>
